<compile_context>
chip_gen: v5e
topology: v5e:2x2
jax: 0.10.0
libtpu: 0.0.40
codegen_flags: <defaults>
</compile_context>

<pallas_src>
import functools

import jax
import jax.numpy as jnp
from jax.experimental import pallas as pl
from jax.experimental.pallas import tpu as pltpu

_LANE_CANDIDATES = (1024, 512, 256, 128)   # preferred lane-dense slab widths
_DEFAULT_MAX_TILE_ROWS = 1024              # up to 4 MiB f32 per input block @ lane=1024
_VMEM_TILE_BUDGET = 28 * 1024 * 1024       # target for double-buffered streamed bytes
_VMEM_LIMIT_BYTES = 40 * 1024 * 1024       # safe on v7x (64 MiB) and v5e/v6e (128 MiB)


def _round_up(x, m):
    return -(-x // m) * m


def _round_down(x, m):
    return (x // m) * m


def _sublane_min(dtype):
    # Minimum second-to-last tile dim for a dtype on TPU.
    return {4: 8, 2: 16, 1: 32}.get(jnp.dtype(dtype).itemsize, 8)


def _bce(x, y):
    # Numerically-stable BCEWithLogitsLoss (reduction='none'):
    #   loss = max(x, 0) - x*y + log(1 + exp(-|x|))
    # exp argument is always <= 0, so no overflow even on garbage padded rows.
    return jnp.maximum(x, 0.0) - x * y + jnp.log1p(jnp.exp(-jnp.abs(x)))


def _loss_tile(x_ref, y_ref, w_ref):
    x = x_ref[...].astype(jnp.float32)
    y = y_ref[...].astype(jnp.float32)
    loss = _bce(x, y)
    if w_ref is not None:
        loss = loss * w_ref[...].astype(jnp.float32)
    return loss


def _masked(loss, valid_rows, tile_rows, mask_rows):
    if not mask_rows:
        return loss
    row = pl.program_id(0) * tile_rows + jax.lax.broadcasted_iota(
        jnp.int32, loss.shape, 0)
    # select (not multiply) so garbage in out-of-range rows cannot produce NaN.
    return jnp.where(row < valid_rows, loss, 0.0)


# ----------------------------- kernels --------------------------------------

def _sum_kernel(x_ref, y_ref, out_ref, *, valid_rows, tile_rows, mask_rows):
    loss = _masked(_loss_tile(x_ref, y_ref, None), valid_rows, tile_rows, mask_rows)
    tr, lane = loss.shape
    # (8, lane) per-block partial sums: pure VPU adds, no cross-lane XLU work.
    out_ref[...] = loss.reshape(tr // 8, 8, lane).sum(axis=0)


def _sum_kernel_weighted(x_ref, y_ref, w_ref, out_ref, *, valid_rows, tile_rows,
                         mask_rows):
    loss = _masked(_loss_tile(x_ref, y_ref, w_ref), valid_rows, tile_rows, mask_rows)
    tr, lane = loss.shape
    out_ref[...] = loss.reshape(tr // 8, 8, lane).sum(axis=0)


def _elem_kernel(x_ref, y_ref, out_ref):
    # Out-of-range rows in the last partial block are dropped by the writeback.
    out_ref[...] = _loss_tile(x_ref, y_ref, None)


def _elem_kernel_weighted(x_ref, y_ref, w_ref, out_ref):
    out_ref[...] = _loss_tile(x_ref, y_ref, w_ref)


# ----------------------------- wrapper ---------------------------------------

@functools.partial(jax.jit,
                   static_argnames=("top_k_percent_pixels", "max_tile_rows"))
def deeplab_bce(logits, labels, weights=None, *,
                top_k_percent_pixels=1.0, max_tile_rows=_DEFAULT_MAX_TILE_ROWS):
    """JAX/Pallas equivalent of DeepLabBCE.forward.

    logits:  [B, 1, H, W] float (any float dtype; upcast to f32 on the VPU)
    labels:  [B, H, W]    numeric (f32/bf16/u8 all fine; upcast in-kernel)
    weights: optional [B, H, W] (narrow dtypes welcome; upcast in-kernel)

    Returns a scalar f32 loss.  Note: the weighted mean divides by the pixel
    count (matching torch's per-pixel loss * w then .mean()), not by sum(w).
    """
    logits2 = jnp.squeeze(logits, axis=1)          # [B, H, W], native dtype
    n_valid = logits2.size                          # static Python int
    assert labels.size == n_valid

    # ---- slab selection: free reshapes only, never jnp.pad ------------------
    lane = None
    for c in _LANE_CANDIDATES:
        if n_valid % c == 0 and n_valid // c >= 8:
            lane = c
            break
    if lane is None:
        lane = logits2.shape[-1]                    # full last dim is always legal
    rows = n_valid // lane

    def slab(a):
        return a.reshape(rows, lane)                # bitcast-level reshape

    ins = [slab(logits2), slab(labels)]
    if weights is not None:
        ins.append(slab(weights))

    # ---- tile sizing ---------------------------------------------------------
    row_align = max(_sublane_min(a.dtype) for a in ins)     # narrowest dtype wins
    topk_path = (top_k_percent_pixels != 1.0)
    stream_bytes_per_row = lane * (sum(a.dtype.itemsize for a in ins)
                                   + (4 if topk_path else 0))
    tr = min(max(1, _VMEM_TILE_BUDGET // (2 * stream_bytes_per_row)),
             max(1, int(max_tile_rows)),
             _round_up(rows, row_align))
    tr = max(row_align, _round_down(tr, row_align))
    grid = (pl.cdiv(rows, tr),)
    mask_rows = (grid[0] * tr != rows)              # ragged tail handled in-kernel

    in_specs = [pl.BlockSpec((tr, lane), lambda i: (i, 0)) for _ in ins]
    bytes_in = sum(int(a.size) * a.dtype.itemsize for a in ins)
    compiler_params = pltpu.CompilerParams(
        dimension_semantics=("parallel",),
        vmem_limit_bytes=_VMEM_LIMIT_BYTES,
    )

    if not topk_path:
        base = _sum_kernel if weights is None else _sum_kernel_weighted
        kernel = functools.partial(base, valid_rows=rows, tile_rows=tr,
                                   mask_rows=mask_rows)
        out_bytes = grid[0] * 8 * lane * 4
        partials = pl.pallas_call(
            kernel,
            out_shape=jax.ShapeDtypeStruct((grid[0] * 8, lane), jnp.float32),
            grid_spec=pltpu.PrefetchScalarGridSpec(
                num_scalar_prefetch=0,
                grid=grid,
                in_specs=in_specs,
                out_specs=pl.BlockSpec((8, lane), lambda i: (i, 0)),
            ),
            compiler_params=compiler_params,
            cost_estimate=pl.CostEstimate(
                flops=6 * n_valid,
                transcendentals=2 * n_valid,
                bytes_accessed=bytes_in + out_bytes),
        )(*ins)
        return jnp.sum(partials) / jnp.float32(n_valid)

    # Hard-pixel-mining path: per-pixel losses in Pallas, top-k selection in JAX.
    kernel = _elem_kernel if weights is None else _elem_kernel_weighted
    out_bytes = rows * lane * 4
    pixel_losses = pl.pallas_call(
        kernel,
        out_shape=jax.ShapeDtypeStruct((rows, lane), jnp.float32),
        grid_spec=pltpu.PrefetchScalarGridSpec(
            num_scalar_prefetch=0,
            grid=grid,
            in_specs=in_specs,
            out_specs=pl.BlockSpec((tr, lane), lambda i: (i, 0)),
        ),
        compiler_params=compiler_params,
        cost_estimate=pl.CostEstimate(
            flops=6 * n_valid,
            transcendentals=2 * n_valid,
            bytes_accessed=bytes_in + out_bytes),
    )(*ins)

    flat = pixel_losses.reshape(-1)                 # exactly n_valid elements
    top_k = max(1, int(top_k_percent_pixels * n_valid))
    # TODO(synk): replace sort-based exact top-k with a two-pass in-kernel
    # histogram/threshold selection (per-block histograms -> k-th bin -> masked
    # sum & count); jax.lax.top_k dominates this path's runtime.
    top_vals, _ = jax.lax.top_k(flat, top_k)
    return jnp.mean(top_vals)


# ----------------------------- reference -------------------------------------

def _reference(logits, labels, weights=None, top_k_percent_pixels=1.0):
    """Pure-JAX reference matching the PyTorch semantics."""
    x = jnp.squeeze(logits, axis=1).astype(jnp.float32)
    y = labels.astype(jnp.float32)
    loss = jnp.maximum(x, 0.0) - x * y + jnp.log1p(jnp.exp(-jnp.abs(x)))
    if weights is not None:
        loss = loss * weights.astype(jnp.float32)
    flat = loss.reshape(-1)
    if top_k_percent_pixels == 1.0:
        return jnp.mean(flat)
    k = max(1, int(top_k_percent_pixels * flat.size))
    top_vals, _ = jax.lax.top_k(flat, k)
    return jnp.mean(top_vals)


if __name__ == "__main__":
    key = jax.random.PRNGKey(0)
    k1, k2, k3 = jax.random.split(key, 3)

    B, H, W = 2, 16, 16
    logits = jax.random.normal(k1, (B, 1, H, W), dtype=jnp.float32)
    labels = jax.random.bernoulli(k2, 0.5, (B, H, W)).astype(jnp.float32)
    weights = jax.random.uniform(k3, (B, H, W), dtype=jnp.float32)

    # Unweighted mean path (small W -> full-last-dim slab).
    out_mean = deeplab_bce(logits, labels, None, top_k_percent_pixels=1.0)
    jax.block_until_ready(out_mean)
    ref_mean = _reference(logits, labels, None, 1.0)
    assert jnp.allclose(out_mean, ref_mean, rtol=1e-5, atol=1e-5), (out_mean, ref_mean)

    # Weighted mean path.
    out_w = deeplab_bce(logits, labels, weights, top_k_percent_pixels=1.0)
    jax.block_until_ready(out_w)
    ref_w = _reference(logits, labels, weights, 1.0)
    assert jnp.allclose(out_w, ref_w, rtol=1e-5, atol=1e-5), (out_w, ref_w)

    # Native bf16 logits (upcast happens inside the kernel, not in HBM).
    out_bf16 = deeplab_bce(logits.astype(jnp.bfloat16), labels, None,
                           top_k_percent_pixels=1.0)
    jax.block_until_ready(out_bf16)
    ref_bf16 = _reference(logits.astype(jnp.bfloat16), labels, None, 1.0)
    assert jnp.allclose(out_bf16, ref_bf16, rtol=1e-5, atol=1e-5), (out_bf16, ref_bf16)

    # Hard pixel mining path (top 25% pixels).
    out_topk = deeplab_bce(logits, labels, None, top_k_percent_pixels=0.25)
    jax.block_until_ready(out_topk)
    ref_topk = _reference(logits, labels, None, 0.25)
    assert jnp.allclose(out_topk, ref_topk, rtol=1e-5, atol=1e-5), (out_topk, ref_topk)

    # Lane-dense slab path with a multi-block grid (small tile override).
    B2, H2, W2 = 2, 64, 128
    kk1, kk2, kk3 = jax.random.split(jax.random.PRNGKey(0), 3)
    logits_l = jax.random.normal(kk1, (B2, 1, H2, W2), dtype=jnp.float32)
    labels_l = jax.random.bernoulli(kk2, 0.5, (B2, H2, W2)).astype(jnp.float32)
    weights_l = jax.random.uniform(kk3, (B2, H2, W2), dtype=jnp.float32)
    out_l = deeplab_bce(logits_l, labels_l, weights_l,
                        top_k_percent_pixels=1.0, max_tile_rows=8)
    jax.block_until_ready(out_l)
    ref_l = _reference(logits_l, labels_l, weights_l, 1.0)
    assert jnp.allclose(out_l, ref_l, rtol=1e-5, atol=1e-5), (out_l, ref_l)

    # Ragged row count -> partial last block handled by the in-kernel row mask.
    B3, H3, W3 = 1, 24, 96
    kr1, kr2 = jax.random.split(jax.random.PRNGKey(1), 2)
    logits_r = jax.random.normal(kr1, (B3, 1, H3, W3), dtype=jnp.float32)
    labels_r = jax.random.bernoulli(kr2, 0.5, (B3, H3, W3)).astype(jnp.float32)
    out_r = deeplab_bce(logits_r, labels_r, None,
                        top_k_percent_pixels=1.0, max_tile_rows=8)
    jax.block_until_ready(out_r)
    ref_r = _reference(logits_r, labels_r, None, 1.0)
    assert jnp.allclose(out_r, ref_r, rtol=1e-5, atol=1e-5), (out_r, ref_r)

    # bf16 labels/weights streamed narrow (row alignment auto-raised to 16).
    out_nb = deeplab_bce(logits_l.astype(jnp.bfloat16),
                         labels_l.astype(jnp.bfloat16),
                         weights_l.astype(jnp.bfloat16),
                         top_k_percent_pixels=1.0, max_tile_rows=8)
    jax.block_until_ready(out_nb)
    ref_nb = _reference(logits_l.astype(jnp.bfloat16),
                        labels_l.astype(jnp.bfloat16),
                        weights_l.astype(jnp.bfloat16), 1.0)
    assert jnp.allclose(out_nb, ref_nb, rtol=1e-5, atol=1e-5), (out_nb, ref_nb)

    print("KERNEL_OK")
</pallas_src>

<mosaic_0001>
module attributes {stable_mosaic.version = 11 : i64} {
  func.func @_sum_kernel(%arg0: i32, %arg1: memref<32x16xf32, #tpu.memory_space<vmem>>, %arg2: memref<32x16xf32, #tpu.memory_space<vmem>>, %arg3: memref<8x16xf32, #tpu.memory_space<vmem>>) attributes {dimension_semantics = [#tpu.dimension_semantics<parallel>], iteration_bounds = array<i64: 1>, scalar_prefetch = 0 : i64, scratch_operands = 0 : i64, tpu.core_type = #tpu.core_type<tc>, window_params = [{transform_indices = @transform_0, window_bounds = array<i64: 32, 16>}, {transform_indices = @transform_1, window_bounds = array<i64: 32, 16>}, {transform_indices = @transform_2, window_bounds = array<i64: 8, 16>}]} {
    %c0 = arith.constant 0 : index
    %c0_0 = arith.constant 0 : index
    %0 = vector.load %arg1[%c0, %c0_0] : memref<32x16xf32, #tpu.memory_space<vmem>>, vector<32x16xf32>
    %c0_1 = arith.constant 0 : index
    %c0_2 = arith.constant 0 : index
    %1 = vector.load %arg2[%c0_1, %c0_2] : memref<32x16xf32, #tpu.memory_space<vmem>>, vector<32x16xf32>
    %cst = arith.constant 0.000000e+00 : f32
    %2 = vector.broadcast %cst : f32 to vector<32x16xf32>
    %3 = arith.maximumf %0, %2 : vector<32x16xf32>
    %4 = arith.mulf %0, %1 : vector<32x16xf32>
    %5 = arith.subf %3, %4 : vector<32x16xf32>
    %6 = math.absf %0 : vector<32x16xf32>
    %cst_3 = arith.constant 0.000000e+00 : f32
    %7 = vector.broadcast %cst_3 : f32 to vector<32x16xf32>
    %8 = arith.subf %7, %6 : vector<32x16xf32>
    %9 = math.exp %8 : vector<32x16xf32>
    %10 = math.log1p %9 : vector<32x16xf32>
    %11 = arith.addf %5, %10 : vector<32x16xf32>
    %12 = vector.shape_cast %11 : vector<32x16xf32> to vector<4x8x16xf32>
    %cst_4 = arith.constant dense<0.000000e+00> : vector<8x16xf32>
    %13 = vector.multi_reduction <add>, %12, %cst_4 [0] : vector<4x8x16xf32> to vector<8x16xf32>
    %c0_5 = arith.constant 0 : index
    %c0_6 = arith.constant 0 : index
    %14 = vector.load %arg3[%c0_5, %c0_6] : memref<8x16xf32, #tpu.memory_space<vmem>>, vector<8x16xf32>
    tpu.vector_store %arg3[%c0_5, %c0_6], %13 {strides = array<i32>} : memref<8x16xf32, #tpu.memory_space<vmem>>, vector<8x16xf32>,
    return
  }
  func.func @transform_0(%arg0: i32) -> (i32, i32) {
    %c0_i32 = arith.constant 0 : i32
    %c0_i32_0 = arith.constant 0 : i32
    return %arg0, %c0_i32 : i32, i32
  }
  func.func @transform_1(%arg0: i32) -> (i32, i32) {
    %c0_i32 = arith.constant 0 : i32
    %c0_i32_0 = arith.constant 0 : i32
    return %arg0, %c0_i32 : i32, i32
  }
  func.func @transform_2(%arg0: i32) -> (i32, i32) {
    %c0_i32 = arith.constant 0 : i32
    %c0_i32_0 = arith.constant 0 : i32
    return %arg0, %c0_i32 : i32, i32
  }
}

</mosaic_0001>

<llo_original>
// kernel: deeplab_bce.1
$region0: #{deeplab_bce.1}
  #allocation0 [shape = 'u32[]', space=smem, size = 0x4, offset = 0x4, fixed_abs, tag = 'smem constant byte address 0x4 - core index']
  #allocation1 [shape = 'u32[72,128]{1,0:T(1,128)}', space=vmem, size = 0x9000, scoped, tag = 'internal scratch']
  %s0 = inlined_call_operand.hbm [shape: f32[32,16], index: 0, kind: input, shape index: {}]
  %s1 = inlined_call_operand.hbm [shape: f32[32,16], index: 1, kind: input, shape index: {}]
  %s2 = inlined_call_operand.vmem [shape: f32[8,16], index: 2, kind: output, shape index: {}]
  %s3 = sld [smem:[#allocation0]]
  $region26: #{deeplab_bce.1} parent=0
    _
  %s5 = ssub.s32 1, %s3
  %s6 = scalar_select 0, %s5, %s3
  $region1: #{deeplab_bce.1} parent=0
    #allocation2 [shape = 'u8[16384]{0}', space=vmem, size = 0x4000, scoped, tag = 'input window, operand 0, single buffered']
    #allocation3 [shape = 's32[1]{0}', space=sflag, size = 0x4, scoped, tag = 'scoped memory for deeplab_bce.1']
    #allocation4 [shape = 'u8[16384]{0}', space=vmem, size = 0x4000, scoped, tag = 'input window, operand 1, single buffered']
    #allocation5 [shape = 's32[1]{0}', space=sflag, size = 0x4, scoped, tag = 'scoped memory for deeplab_bce.1']
    %7 = vsyncpa [#allocation3], 0
    %8 = vsyncpa [#allocation5], 0
    // Predicated region
    $region2: #{deeplab_bce.1} parent=1 // pred_check
      _
    $region3: #{deeplab_bce.1} parent=1 // pred_check_branch
      %10 = sbr.rel (0) target = $region5
    $region4: #{deeplab_bce.1} parent=1 // pred_region
      %12 = vsyncadd [#allocation3], 0
      %s13 = sshll.u32 %s0, 4
      %s14 = int_to_ptr.hbm [resolvable:$true] %s13
      %s15 = sshll.u32 [#allocation2], 4
      %s16 = int_to_ptr.vmem [resolvable:$true] %s15
      %21 = dma.hbm_to_vmem [thread:$0]  %s14, 512, %s16, [#allocation3], 128, 128, 8
    $region5: #{deeplab_bce.1} parent=1 // pred_fallthru
      _
    // Predicated region
    $region6: #{deeplab_bce.1} parent=1 // pred_check
      _
    $region7: #{deeplab_bce.1} parent=1 // pred_check_branch
      %23 = sbr.rel (0) target = $region9
    $region8: #{deeplab_bce.1} parent=1 // pred_region
      %25 = vsyncadd [#allocation5], 0
      %s26 = sshll.u32 %s1, 4
      %s27 = int_to_ptr.hbm [resolvable:$true] %s26
      %s28 = sshll.u32 [#allocation4], 4
      %s29 = int_to_ptr.vmem [resolvable:$true] %s28
      %34 = dma.hbm_to_vmem [thread:$0]  %s27, 512, %s29, [#allocation5], 128, 128, 8
    $region9: #{deeplab_bce.1} parent=1 // pred_fallthru
      _
    // Predicated region
    $region10: #{deeplab_bce.1} parent=1 // pred_check
      _
    $region11: #{deeplab_bce.1} parent=1 // pred_check_branch
      %36 = sbr.rel (0) target = $region13
    $region12: #{deeplab_bce.1} parent=1 // pred_region
      %38 = dma.done [#allocation3], 512
    $region13: #{deeplab_bce.1} parent=1 // pred_fallthru
      _
    // Predicated region
    $region14: #{deeplab_bce.1} parent=1 // pred_check
      _
    $region15: #{deeplab_bce.1} parent=1 // pred_check_branch
      %40 = sbr.rel (0) target = $region17
    $region16: #{deeplab_bce.1} parent=1 // pred_region
      %42 = dma.done [#allocation5], 512
    $region17: #{deeplab_bce.1} parent=1 // pred_fallthru
      _
    %v43 = vld [vmem:[#allocation2] sm:$0xff]
    %v44 = vld [vmem:[#allocation2 + $0x8] sm:$0xff]
    %v45 = vld [vmem:[#allocation2 + $0x10] sm:$0xff]
    %v46 = vld [vmem:[#allocation2 + $0x18] sm:$0xff]
    %v47 = vld [vmem:[#allocation4] sm:$0xff]
    %v48 = vld [vmem:[#allocation4 + $0x8] sm:$0xff]
    %v49 = vld [vmem:[#allocation4 + $0x10] sm:$0xff]
    %v50 = vld [vmem:[#allocation4 + $0x18] sm:$0xff]
    %v51 = vmax.f32 %v43, 0.0
    %v52 = vmax.f32 %v44, 0.0
    %v53 = vmax.f32 %v45, 0.0
    %v54 = vmax.f32 %v46, 0.0
    %v55 = vmul.f32 %v43, %v47
    %v56 = vmul.f32 %v44, %v48
    %v57 = vmul.f32 %v45, %v49
    %v58 = vmul.f32 %v46, %v50
    %v59 = vsub.f32 %v51, %v55
    %v60 = vsub.f32 %v52, %v56
    %v61 = vsub.f32 %v53, %v57
    %v62 = vsub.f32 %v54, %v58
    %v63 = vand.u32 2147483647, %v43
    %v64 = vand.u32 2147483647, %v44
    %v65 = vand.u32 2147483647, %v45
    %v66 = vand.u32 2147483647, %v46
    %v67 = vsub.f32 0.0, %v63
    %v68 = vsub.f32 0.0, %v64
    %v69 = vsub.f32 0.0, %v65
    %v70 = vsub.f32 0.0, %v66
    %v71 = vmul.f32 %v67, 1.442695
    %v72 = vpow.pop %v71
    %v73 = vmul.f32 %v68, 1.442695
    %v74 = vpow.pop %v73
    %v75 = vmul.f32 %v69, 1.442695
    %v76 = vpow.pop %v75
    %v77 = vmul.f32 %v70, 1.442695
    %v78 = vpow.pop %v77
    %v79 = vadd.f32 %v72, 1.0
    %v80 = vlog2.pop %v79
    %v81 = vmul.f32 %v80, 0.6931472
    %v82 = vmul.f32 -0.5, %v72
    %v83 = vadd.f32 %v82, 1.0
    %v84 = vmul.f32 %v83, %v72
    %v85 = vand.u32 2147483647, %v72
    %vm86 = vcmp.lt.f32.partialorder %v85, 0.0004427343
    %v87 = vsel %vm86, %v84, %v81
    %v88 = vadd.f32 %v74, 1.0
    %v89 = vlog2.pop %v88
    %v90 = vmul.f32 %v89, 0.6931472
    %v91 = vmul.f32 -0.5, %v74
    %v92 = vadd.f32 %v91, 1.0
    %v93 = vmul.f32 %v92, %v74
    %v94 = vand.u32 2147483647, %v74
    %vm95 = vcmp.lt.f32.partialorder %v94, 0.0004427343
    %v96 = vsel %vm95, %v93, %v90
    %v97 = vadd.f32 %v76, 1.0
    %v98 = vlog2.pop %v97
    %v99 = vmul.f32 %v98, 0.6931472
    %v100 = vmul.f32 -0.5, %v76
    %v101 = vadd.f32 %v100, 1.0
    %v102 = vmul.f32 %v101, %v76
    %v103 = vand.u32 2147483647, %v76
    %vm104 = vcmp.lt.f32.partialorder %v103, 0.0004427343
    %v105 = vsel %vm104, %v102, %v99
    %v106 = vadd.f32 %v78, 1.0
    %v107 = vlog2.pop %v106
    %v108 = vmul.f32 %v107, 0.6931472
    %v109 = vmul.f32 -0.5, %v78
    %v110 = vadd.f32 %v109, 1.0
    %v111 = vmul.f32 %v110, %v78
    %v112 = vand.u32 2147483647, %v78
    %vm113 = vcmp.lt.f32.partialorder %v112, 0.0004427343
    %v114 = vsel %vm113, %v111, %v108
    %v115 = vadd.f32 %v59, %v87
    %v116 = vadd.f32 %v60, %v96
    %v117 = vadd.f32 %v61, %v105
    %v118 = vadd.f32 %v62, %v114
    %vm119 = vcmask 130048
    %v120 = vsel %vm119, %v115, 0.0
    %v121 = vsel %vm119, %v116, 0.0
    %v122 = vadd.f32 %v120, %v121
    %v123 = vsel %vm119, %v117, 0.0
    %v124 = vadd.f32 %v122, %v123
    %v125 = vsel %vm119, %v118, 0.0
    %v126 = vadd.f32 %v124, %v125
    %127 = vst.msk [vmem:[%s2] sm:$0xff] %vm119, %v126
    // Predicated region
    $region18: #{deeplab_bce.1} parent=1 // pred_check
      _
    $region19: #{deeplab_bce.1} parent=1 // pred_check_branch
      %129 = sbr.rel (0) target = $region21
    $region20: #{deeplab_bce.1} parent=1 // pred_region
      _
    $region21: #{deeplab_bce.1} parent=1 // pred_fallthru
      _
    // Predicated region
    $region22: #{deeplab_bce.1} parent=1 // pred_check
      _
    $region23: #{deeplab_bce.1} parent=1 // pred_check_branch
      %131 = sbr.rel (0) target = $region25
    $region24: #{deeplab_bce.1} parent=1 // pred_region
      _
    $region25: #{deeplab_bce.1} parent=1 // pred_fallthru
      _
    %132 = vsyncpa [#allocation3], 1
    %133 = vsyncpa [#allocation5], 1

</llo_original>
